<compile_context>
chip_gen: v7x
topology: tpu7x:2x2x1
jax: 0.10.0
libtpu: 0.0.40
codegen_flags: <defaults>
</compile_context>

<pallas_src>
import numpy as np
import jax
import jax.numpy as jnp
from jax.experimental import pallas as pl
from jax.experimental.pallas import tpu as pltpu

# ----------------------------- configuration --------------------------------
EMSIZE = 100                         # args.emsize
EPAD = 128                           # emsize zero-padded to a full vreg lane width
VOCAB = 50                           # synthetic vocabulary size
VOCAB_PAD = 64                       # padded with zero rows to a sublane multiple
MAX_QUERY_LEN = 8                    # args.max_query_len
N_FILTERS = 16                       # args.filters_1d = (16,)
KERNEL_T = 3                         # args.kernel_size_1d = (3,)
PAD_T = KERNEL_T // 2                # Conv1d 'same' padding
MAXPOOL_T = 2                        # args.maxpool_size_1d = (2,)
POOL_T = MAX_QUERY_LEN // MAXPOOL_T  # pooled time steps (4); mlpQ in-features = 64
D_TILE = 8                           # docs per grid step (sublane aligned)
SCR_ROWS = 16                        # scratch rows >= MAX_QUERY_LEN + 2*PAD_T


# --------------------- one-time layout plumbing helpers ----------------------
def _arci_perm():
    """perm[t*F + f] = f*T + t : torch .flatten(1) of (F, T) is channel-major,
    the kernel pools time-major; absorbed into mlpQ's weight rows."""
    perm = np.zeros(N_FILTERS * POOL_T, dtype=np.int64)
    for t in range(POOL_T):
        for f in range(N_FILTERS):
            perm[t * N_FILTERS + f] = f * POOL_T + t
    return perm


# ------------------------------- fused kernel --------------------------------
def _arci_kernel(emb_ref, qid_ref, did_ref, wc_ref, bc_ref, wq_ref, bq_ref,
                 o_ref, scr_ref):
    emb = emb_ref[...]                                              # (VOCAB_PAD, EPAD)

    # --- in-kernel embedding gather: one-hot matmuls against the VMEM table ---
    q_hot = (jax.lax.broadcasted_iota(jnp.int32, (MAX_QUERY_LEN, VOCAB_PAD), 1)
             == qid_ref[...]).astype(jnp.float32)
    xq = jnp.dot(q_hot, emb, preferred_element_type=jnp.float32)    # (8, EPAD)
    d_hot = (jax.lax.broadcasted_iota(jnp.int32, (D_TILE, VOCAB_PAD), 1)
             == did_ref[...]).astype(jnp.float32)
    dvec = jnp.dot(d_hot, emb, preferred_element_type=jnp.float32)  # (D_TILE, EPAD)

    # --- Conv1d(E, F, K, padding=K//2) as K shifted-window matmuls; windows are
    #     loaded from a zero-padded VMEM scratch slab (no value-slice relayouts) ---
    scr_ref[...] = jnp.zeros_like(scr_ref)
    scr_ref[pl.ds(PAD_T, MAX_QUERY_LEN), :] = xq
    acc = jnp.zeros((MAX_QUERY_LEN, N_FILTERS), jnp.float32)
    for j in range(KERNEL_T):
        acc = acc + jnp.dot(scr_ref[pl.ds(j, MAX_QUERY_LEN), :],
                            wc_ref[pl.ds(j * EPAD, EPAD), :],
                            preferred_element_type=jnp.float32)
    ya = jnp.maximum(acc + bc_ref[...], 0.0)                        # (8, F) time-major

    # --- MaxPool1d(2) + channel-major flatten + mlpQ collapsed into ONE matmul:
    #     RHS is the (F, POOL_T*EPAD) re-blocked weight; each time step's result
    #     lives in its own 128-lane-aligned block. ---
    pooled = jnp.concatenate(
        [jnp.max(ya[MAXPOOL_T * t:MAXPOOL_T * (t + 1), :], axis=0, keepdims=True)
         for t in range(POOL_T)], axis=0)                           # (POOL_T, F)
    m = jnp.dot(pooled, wq_ref[...], preferred_element_type=jnp.float32)
    qv = bq_ref[...]                                                # (1, EPAD)
    for t in range(POOL_T):
        qv = qv + m[t:t + 1, t * EPAD:(t + 1) * EPAD]

    # --- com_rep = mlpQ(conv_queries) broadcast over docs * doc embeddings ---
    o_ref[...] = qv * dvec                                          # (D_TILE, EPAD)


# ------------------------------- forward glue --------------------------------
def arci_forward(kp, batch_queries, batch_docs):
    """ARCI.forward(batch_queries, batch_docs) -> com_rep of shape (num_docs, emsize)."""
    # Reference uses batch_queries[0:1] only (batch_size == 1).
    q_ids = batch_queries[0].astype(jnp.int32).reshape(MAX_QUERY_LEN, 1)
    num_docs = batch_docs.shape[0]
    dpad = ((num_docs + D_TILE - 1) // D_TILE) * D_TILE
    d_ids = jnp.pad(batch_docs.astype(jnp.int32).reshape(num_docs, 1),
                    ((0, dpad - num_docs), (0, 0)))

    out = pl.pallas_call(
        _arci_kernel,
        out_shape=jax.ShapeDtypeStruct((dpad, EPAD), jnp.float32),
        grid=(dpad // D_TILE,),
        in_specs=[
            pl.BlockSpec((VOCAB_PAD, EPAD), lambda i: (0, 0)),              # emb table
            pl.BlockSpec((MAX_QUERY_LEN, 1), lambda i: (0, 0)),             # query ids
            pl.BlockSpec((D_TILE, 1), lambda i: (i, 0)),                    # doc ids (tiled)
            pl.BlockSpec((KERNEL_T * EPAD, N_FILTERS), lambda i: (0, 0)),   # conv weight
            pl.BlockSpec((1, N_FILTERS), lambda i: (0, 0)),                 # conv bias
            pl.BlockSpec((N_FILTERS, POOL_T * EPAD), lambda i: (0, 0)),     # mlpQ weight
            pl.BlockSpec((1, EPAD), lambda i: (0, 0)),                      # mlpQ bias
        ],
        out_specs=pl.BlockSpec((D_TILE, EPAD), lambda i: (i, 0)),
        scratch_shapes=[pltpu.VMEM((SCR_ROWS, EPAD), jnp.float32)],
        compiler_params=pltpu.CompilerParams(dimension_semantics=("parallel",)),
    )(kp["emb"], q_ids, d_ids, kp["wconv"], kp["bconv"], kp["wq"], kp["bq"])
    return out[:num_docs, :EMSIZE]


# ------------------------- deterministic parameters --------------------------
def init_params(key):
    """Synthetic parameters in their native torch layouts."""
    ks = jax.random.split(key, 5)
    p = {}
    # TODO(synk): the reference looks embeddings up via a python dict (wv /
    # index_to_word); replaced by a dense (VOCAB, emsize) table gathered in-kernel.
    p["wv"] = jax.random.normal(ks[0], (VOCAB, EMSIZE), jnp.float32) * 0.5
    p["conv1d"] = (jax.random.normal(ks[1], (N_FILTERS, EMSIZE, KERNEL_T), jnp.float32) * 0.1,
                   jax.random.normal(ks[2], (N_FILTERS,), jnp.float32) * 0.1)     # Conv1d(E,F,K)
    p["mlpQ"] = (jax.random.normal(ks[3], (EMSIZE, N_FILTERS * POOL_T), jnp.float32) * 0.1,
                 jax.random.normal(ks[4], (EMSIZE,), jnp.float32) * 0.1)          # Linear(64, E)
    return p


def prepare_kernel_params(p):
    """One-time torch-layout -> kernel layout plumbing (zero-padding + flatten-order
    bookkeeping absorbed here so the kernel never transposes or gathers activations)."""
    emb = jnp.pad(p["wv"], ((0, VOCAB_PAD - VOCAB), (0, EPAD - EMSIZE)))
    w, b = p["conv1d"]                                    # (F, E, K), (F,)
    wc = jnp.transpose(w, (2, 1, 0))                      # (K, E, F): per-shift matmul weights
    wc = jnp.pad(wc, ((0, 0), (0, EPAD - EMSIZE), (0, 0))).reshape(KERNEL_T * EPAD, N_FILTERS)
    wq, bq = p["mlpQ"]                                    # (E, F*T), (E,)
    wq_t = jnp.pad(wq.T[_arci_perm()], ((0, 0), (0, EPAD - EMSIZE)))   # (F*T, EPAD) time-major rows
    wq_big = (wq_t.reshape(POOL_T, N_FILTERS, EPAD)
              .transpose(1, 0, 2).reshape(N_FILTERS, POOL_T * EPAD))   # (F, T*EPAD)
    return {"emb": emb,
            "wconv": wc,
            "bconv": b.reshape(1, N_FILTERS),
            "wq": wq_big,
            "bq": jnp.pad(bq, (0, EPAD - EMSIZE)).reshape(1, EPAD)}


# ------------------------------ pure-JAX reference ----------------------------
def arci_reference(p, batch_queries, batch_docs):
    """Direct mirror of the PyTorch ARCI.forward, used as a numerical check."""
    wv = p["wv"]
    w, b = p["conv1d"]
    wq, bq = p["mlpQ"]
    x = wv[batch_queries[0]].T[None]                      # (1, E, L)
    y = jax.lax.conv_general_dilated(
        x, w, window_strides=(1,), padding=[(PAD_T, PAD_T)],
        dimension_numbers=("NCH", "OIH", "NCH")) + b[None, :, None]
    y = jnp.maximum(y, 0.0)                               # (1, F, L)
    pooled = y.reshape(N_FILTERS, POOL_T, MAXPOOL_T).max(axis=-1)      # (F, T)
    flat = pooled.reshape(1, N_FILTERS * POOL_T)          # channel-major flatten(1)
    conv_q = flat @ wq.T + bq                             # (1, E); identical row per doc
    return conv_q * wv[batch_docs]                        # (num_docs, E)


# ----------------------------------- main -------------------------------------
if __name__ == "__main__":
    key = jax.random.PRNGKey(0)
    pkey, qkey, dkey = jax.random.split(key, 3)
    raw = init_params(pkey)
    kp = prepare_kernel_params(raw)

    num_queries, num_docs = 3, 2
    batch_queries = jax.random.randint(qkey, (num_queries, MAX_QUERY_LEN), 0, VOCAB)
    batch_docs = jax.random.randint(dkey, (num_docs,), 0, VOCAB)

    fwd = jax.jit(arci_forward)
    com_rep = jax.block_until_ready(fwd(kp, batch_queries, batch_docs))
    assert com_rep.shape == (num_docs, EMSIZE), com_rep.shape
    assert bool(jnp.all(jnp.isfinite(com_rep)))

    ref = arci_reference(raw, batch_queries, batch_docs)
    assert bool(jnp.allclose(com_rep, ref, rtol=2e-3, atol=2e-3)), (
        float(jnp.max(jnp.abs(com_rep - ref))))
    print("KERNEL_OK")
</pallas_src>

<mosaic_0001>
module attributes {stable_mosaic.version = 11 : i64} {
  func.func @_arci_kernel(%arg0: i32, %arg1: memref<64x128xf32, #tpu.memory_space<vmem>>, %arg2: memref<8x1xi32, #tpu.memory_space<vmem>>, %arg3: memref<8x1xi32, #tpu.memory_space<vmem>>, %arg4: memref<384x16xf32, #tpu.memory_space<vmem>>, %arg5: memref<1x16xf32, #tpu.memory_space<vmem>>, %arg6: memref<16x512xf32, #tpu.memory_space<vmem>>, %arg7: memref<1x128xf32, #tpu.memory_space<vmem>>, %arg8: memref<8x128xf32, #tpu.memory_space<vmem>>, %arg9: memref<16x128xf32, #tpu.memory_space<vmem>>) attributes {dimension_semantics = [#tpu.dimension_semantics<parallel>], iteration_bounds = array<i64: 1>, scalar_prefetch = 0 : i64, scratch_operands = 1 : i64, tpu.core_type = #tpu.core_type<tc>, window_params = [{pipeline_mode = #tpu.pipeline_mode<synchronous>, transform_indices = @transform_0, window_bounds = array<i64: 64, 128>}, {pipeline_mode = #tpu.pipeline_mode<synchronous>, transform_indices = @transform_1, window_bounds = array<i64: 8, 1>}, {transform_indices = @transform_2, window_bounds = array<i64: 8, 1>}, {pipeline_mode = #tpu.pipeline_mode<synchronous>, transform_indices = @transform_3, window_bounds = array<i64: 384, 16>}, {pipeline_mode = #tpu.pipeline_mode<synchronous>, transform_indices = @transform_4, window_bounds = array<i64: 1, 16>}, {pipeline_mode = #tpu.pipeline_mode<synchronous>, transform_indices = @transform_5, window_bounds = array<i64: 16, 512>}, {pipeline_mode = #tpu.pipeline_mode<synchronous>, transform_indices = @transform_6, window_bounds = array<i64: 1, 128>}, {transform_indices = @transform_7, window_bounds = array<i64: 8, 128>}]} {
    %c0 = arith.constant 0 : index
    %c0_0 = arith.constant 0 : index
    %0 = vector.load %arg1[%c0, %c0_0] : memref<64x128xf32, #tpu.memory_space<vmem>>, vector<64x128xf32>
    %1 = tpu.iota {dimensions = array<i32: 1>} : vector<8x64xi32>
    %c0_1 = arith.constant 0 : index
    %c0_2 = arith.constant 0 : index
    %2 = vector.load %arg2[%c0_1, %c0_2] : memref<8x1xi32, #tpu.memory_space<vmem>>, vector<8x1xi32>
    %3 = vector.broadcast %2 : vector<8x1xi32> to vector<8x64xi32>
    %4 = arith.cmpi eq, %1, %3 : vector<8x64xi32>
    %5 = arith.extui %4 : vector<8x64xi1> to vector<8x64xi32>
    %6 = arith.sitofp %5 : vector<8x64xi32> to vector<8x64xf32>
    %cst = arith.constant dense<0.000000e+00> : vector<8x128xf32>
    %7 = tpu.matmul %6, %0, %cst {dimension_numbers = #tpu.dot_dimension_numbers<[1], [0], [0], [1], [0, 0, 1, 1], [], []>} : vector<8x64xf32>, vector<64x128xf32>, vector<8x128xf32> -> vector<8x128xf32>
    %8 = tpu.iota {dimensions = array<i32: 1>} : vector<8x64xi32>
    %c0_3 = arith.constant 0 : index
    %c0_4 = arith.constant 0 : index
    %9 = vector.load %arg3[%c0_3, %c0_4] : memref<8x1xi32, #tpu.memory_space<vmem>>, vector<8x1xi32>
    %10 = vector.broadcast %9 : vector<8x1xi32> to vector<8x64xi32>
    %11 = arith.cmpi eq, %8, %10 : vector<8x64xi32>
    %12 = arith.extui %11 : vector<8x64xi1> to vector<8x64xi32>
    %13 = arith.sitofp %12 : vector<8x64xi32> to vector<8x64xf32>
    %cst_5 = arith.constant dense<0.000000e+00> : vector<8x128xf32>
    %14 = tpu.matmul %13, %0, %cst_5 {dimension_numbers = #tpu.dot_dimension_numbers<[1], [0], [0], [1], [0, 0, 1, 1], [], []>} : vector<8x64xf32>, vector<64x128xf32>, vector<8x128xf32> -> vector<8x128xf32>
    %cst_6 = arith.constant 0.000000e+00 : f32
    %15 = vector.broadcast %cst_6 : f32 to vector<16x128xf32>
    %c0_7 = arith.constant 0 : index
    %c0_8 = arith.constant 0 : index
    %16 = vector.load %arg9[%c0_7, %c0_8] : memref<16x128xf32, #tpu.memory_space<vmem>>, vector<16x128xf32>
    tpu.vector_store %arg9[%c0_7, %c0_8], %15 {strides = array<i32>} : memref<16x128xf32, #tpu.memory_space<vmem>>, vector<16x128xf32>,
    %c1 = arith.constant 1 : index
    %c0_9 = arith.constant 0 : index
    %17 = vector.load %arg9[%c1, %c0_9] : memref<16x128xf32, #tpu.memory_space<vmem>>, vector<8x128xf32>
    tpu.vector_store %arg9[%c1, %c0_9], %7 {strides = array<i32>} : memref<16x128xf32, #tpu.memory_space<vmem>>, vector<8x128xf32>,
    %cst_10 = arith.constant 0.000000e+00 : f32
    %18 = vector.broadcast %cst_10 : f32 to vector<8x16xf32>
    %c0_11 = arith.constant 0 : index
    %c0_12 = arith.constant 0 : index
    %19 = vector.load %arg9[%c0_11, %c0_12] : memref<16x128xf32, #tpu.memory_space<vmem>>, vector<8x128xf32>
    %c0_13 = arith.constant 0 : index
    %c0_14 = arith.constant 0 : index
    %20 = vector.load %arg4[%c0_13, %c0_14] : memref<384x16xf32, #tpu.memory_space<vmem>>, vector<128x16xf32>
    %cst_15 = arith.constant dense<0.000000e+00> : vector<8x16xf32>
    %21 = tpu.matmul %19, %20, %cst_15 {dimension_numbers = #tpu.dot_dimension_numbers<[1], [0], [0], [1], [0, 0, 1, 1], [], []>} : vector<8x128xf32>, vector<128x16xf32>, vector<8x16xf32> -> vector<8x16xf32>
    %22 = arith.addf %18, %21 : vector<8x16xf32>
    %c1_16 = arith.constant 1 : index
    %c0_17 = arith.constant 0 : index
    %23 = vector.load %arg9[%c1_16, %c0_17] : memref<16x128xf32, #tpu.memory_space<vmem>>, vector<8x128xf32>
    %c128 = arith.constant 128 : index
    %c0_18 = arith.constant 0 : index
    %24 = vector.load %arg4[%c128, %c0_18] : memref<384x16xf32, #tpu.memory_space<vmem>>, vector<128x16xf32>
    %cst_19 = arith.constant dense<0.000000e+00> : vector<8x16xf32>
    %25 = tpu.matmul %23, %24, %cst_19 {dimension_numbers = #tpu.dot_dimension_numbers<[1], [0], [0], [1], [0, 0, 1, 1], [], []>} : vector<8x128xf32>, vector<128x16xf32>, vector<8x16xf32> -> vector<8x16xf32>
    %26 = arith.addf %22, %25 : vector<8x16xf32>
    %c2 = arith.constant 2 : index
    %c0_20 = arith.constant 0 : index
    %27 = vector.load %arg9[%c2, %c0_20] : memref<16x128xf32, #tpu.memory_space<vmem>>, vector<8x128xf32>
    %c256 = arith.constant 256 : index
    %c0_21 = arith.constant 0 : index
    %28 = vector.load %arg4[%c256, %c0_21] : memref<384x16xf32, #tpu.memory_space<vmem>>, vector<128x16xf32>
    %cst_22 = arith.constant dense<0.000000e+00> : vector<8x16xf32>
    %29 = tpu.matmul %27, %28, %cst_22 {dimension_numbers = #tpu.dot_dimension_numbers<[1], [0], [0], [1], [0, 0, 1, 1], [], []>} : vector<8x128xf32>, vector<128x16xf32>, vector<8x16xf32> -> vector<8x16xf32>
    %30 = arith.addf %26, %29 : vector<8x16xf32>
    %c0_23 = arith.constant 0 : index
    %c0_24 = arith.constant 0 : index
    %31 = vector.load %arg5[%c0_23, %c0_24] : memref<1x16xf32, #tpu.memory_space<vmem>>, vector<1x16xf32>
    %32 = vector.broadcast %31 : vector<1x16xf32> to vector<8x16xf32>
    %33 = arith.addf %30, %32 : vector<8x16xf32>
    %cst_25 = arith.constant 0.000000e+00 : f32
    %34 = vector.broadcast %cst_25 : f32 to vector<8x16xf32>
    %35 = arith.maximumf %33, %34 : vector<8x16xf32>
    %36 = vector.extract_strided_slice %35 {offsets = [0, 0], sizes = [2, 16], strides = [1, 1]} : vector<8x16xf32> to vector<2x16xf32>
    %cst_26 = arith.constant dense<0xFF800000> : vector<16xf32>
    %37 = vector.multi_reduction <maximumf>, %36, %cst_26 [0] : vector<2x16xf32> to vector<16xf32>
    %38 = vector.shape_cast %37 : vector<16xf32> to vector<1x16xf32>
    %39 = vector.extract_strided_slice %35 {offsets = [2, 0], sizes = [2, 16], strides = [1, 1]} : vector<8x16xf32> to vector<2x16xf32>
    %cst_27 = arith.constant dense<0xFF800000> : vector<16xf32>
    %40 = vector.multi_reduction <maximumf>, %39, %cst_27 [0] : vector<2x16xf32> to vector<16xf32>
    %41 = vector.shape_cast %40 : vector<16xf32> to vector<1x16xf32>
    %42 = vector.extract_strided_slice %35 {offsets = [4, 0], sizes = [2, 16], strides = [1, 1]} : vector<8x16xf32> to vector<2x16xf32>
    %cst_28 = arith.constant dense<0xFF800000> : vector<16xf32>
    %43 = vector.multi_reduction <maximumf>, %42, %cst_28 [0] : vector<2x16xf32> to vector<16xf32>
    %44 = vector.shape_cast %43 : vector<16xf32> to vector<1x16xf32>
    %45 = vector.extract_strided_slice %35 {offsets = [6, 0], sizes = [2, 16], strides = [1, 1]} : vector<8x16xf32> to vector<2x16xf32>
    %cst_29 = arith.constant dense<0xFF800000> : vector<16xf32>
    %46 = vector.multi_reduction <maximumf>, %45, %cst_29 [0] : vector<2x16xf32> to vector<16xf32>
    %47 = vector.shape_cast %46 : vector<16xf32> to vector<1x16xf32>
    %48 = tpu.concatenate %38, %41, %44, %47 in 0 : vector<1x16xf32>, vector<1x16xf32>, vector<1x16xf32>, vector<1x16xf32> -> vector<4x16xf32>
    %c0_30 = arith.constant 0 : index
    %c0_31 = arith.constant 0 : index
    %49 = vector.load %arg6[%c0_30, %c0_31] : memref<16x512xf32, #tpu.memory_space<vmem>>, vector<16x512xf32>
    %cst_32 = arith.constant dense<0.000000e+00> : vector<4x512xf32>
    %50 = tpu.matmul %48, %49, %cst_32 {dimension_numbers = #tpu.dot_dimension_numbers<[1], [0], [0], [1], [0, 0, 1, 1], [], []>} : vector<4x16xf32>, vector<16x512xf32>, vector<4x512xf32> -> vector<4x512xf32>
    %c0_33 = arith.constant 0 : index
    %c0_34 = arith.constant 0 : index
    %51 = vector.load %arg7[%c0_33, %c0_34] : memref<1x128xf32, #tpu.memory_space<vmem>>, vector<1x128xf32>
    %52 = vector.extract_strided_slice %50 {offsets = [0, 0], sizes = [1, 128], strides = [1, 1]} : vector<4x512xf32> to vector<1x128xf32>
    %53 = arith.addf %51, %52 : vector<1x128xf32>
    %54 = vector.extract_strided_slice %50 {offsets = [1, 128], sizes = [1, 128], strides = [1, 1]} : vector<4x512xf32> to vector<1x128xf32>
    %55 = arith.addf %53, %54 : vector<1x128xf32>
    %56 = vector.extract_strided_slice %50 {offsets = [2, 256], sizes = [1, 128], strides = [1, 1]} : vector<4x512xf32> to vector<1x128xf32>
    %57 = arith.addf %55, %56 : vector<1x128xf32>
    %58 = vector.extract_strided_slice %50 {offsets = [3, 384], sizes = [1, 128], strides = [1, 1]} : vector<4x512xf32> to vector<1x128xf32>
    %59 = arith.addf %57, %58 : vector<1x128xf32>
    %60 = vector.broadcast %59 : vector<1x128xf32> to vector<8x128xf32>
    %61 = arith.mulf %60, %14 : vector<8x128xf32>
    %c0_35 = arith.constant 0 : index
    %c0_36 = arith.constant 0 : index
    %62 = vector.load %arg8[%c0_35, %c0_36] : memref<8x128xf32, #tpu.memory_space<vmem>>, vector<8x128xf32>
    tpu.vector_store %arg8[%c0_35, %c0_36], %61 {strides = array<i32>} : memref<8x128xf32, #tpu.memory_space<vmem>>, vector<8x128xf32>,
    return
  }
  func.func @transform_0(%arg0: i32) -> (i32, i32) {
    %c0_i32 = arith.constant 0 : i32
    %c0_i32_0 = arith.constant 0 : i32
    %c0_i32_1 = arith.constant 0 : i32
    return %c0_i32, %c0_i32_0 : i32, i32
  }
  func.func @transform_1(%arg0: i32) -> (i32, i32) {
    %c0_i32 = arith.constant 0 : i32
    %c0_i32_0 = arith.constant 0 : i32
    %c0_i32_1 = arith.constant 0 : i32
    return %c0_i32, %c0_i32_0 : i32, i32
  }
  func.func @transform_2(%arg0: i32) -> (i32, i32) {
    %c0_i32 = arith.constant 0 : i32
    %c0_i32_0 = arith.constant 0 : i32
    return %arg0, %c0_i32 : i32, i32
  }
  func.func @transform_3(%arg0: i32) -> (i32, i32) {
    %c0_i32 = arith.constant 0 : i32
    %c0_i32_0 = arith.constant 0 : i32
    %c0_i32_1 = arith.constant 0 : i32
    return %c0_i32, %c0_i32_0 : i32, i32
  }
  func.func @transform_4(%arg0: i32) -> (i32, i32) {
    %c0_i32 = arith.constant 0 : i32
    %c0_i32_0 = arith.constant 0 : i32
    %c0_i32_1 = arith.constant 0 : i32
    return %c0_i32, %c0_i32_0 : i32, i32
  }
  func.func @transform_5(%arg0: i32) -> (i32, i32) {
    %c0_i32 = arith.constant 0 : i32
    %c0_i32_0 = arith.constant 0 : i32
    %c0_i32_1 = arith.constant 0 : i32
    return %c0_i32, %c0_i32_0 : i32, i32
  }
  func.func @transform_6(%arg0: i32) -> (i32, i32) {
    %c0_i32 = arith.constant 0 : i32
    %c0_i32_0 = arith.constant 0 : i32
    %c0_i32_1 = arith.constant 0 : i32
    return %c0_i32, %c0_i32_0 : i32, i32
  }
  func.func @transform_7(%arg0: i32) -> (i32, i32) {
    %c0_i32 = arith.constant 0 : i32
    %c0_i32_0 = arith.constant 0 : i32
    return %arg0, %c0_i32 : i32, i32
  }
}

</mosaic_0001>

<llo_original>
// kernel: arci_forward.1
$region0: #{arci_forward.1}
  #allocation0 [shape = 'u32[]', space=smem, size = 0x4, offset = 0x4, fixed_abs, tag = 'smem constant byte address 0x4 - core index']
  #allocation1 [shape = 'u32[144,128]{1,0:T(1,128)}', space=vmem, size = 0x12000, scoped, tag = 'internal scratch']
  #allocation2 [shape = 'f32[16,128]{1,0:T(8,128)}', space=vmem, size = 0x2000, scoped, tag = 'scratch operand']
  %s0 = inlined_call_operand.vmem [shape: f32[64,128], index: 0, kind: input, shape index: {}]
  %s1 = inlined_call_operand.vmem [shape: s32[8,1], index: 1, kind: input, shape index: {}]
  %s2 = inlined_call_operand.vmem [shape: s32[8,1], index: 2, kind: input, shape index: {}]
  %s3 = inlined_call_operand.vmem [shape: f32[384,16], index: 3, kind: input, shape index: {}]
  %s4 = inlined_call_operand.vmem [shape: f32[1,16], index: 4, kind: input, shape index: {}]
  %s5 = inlined_call_operand.vmem [shape: f32[16,512], index: 5, kind: input, shape index: {}]
  %s6 = inlined_call_operand.vmem [shape: f32[1,128], index: 6, kind: input, shape index: {}]
  %s7 = inlined_call_operand.vmem [shape: f32[8,128], index: 7, kind: output, shape index: {}]
  %s8 = sld [smem:[#allocation0]]
  $region38: #{arci_forward.1} parent=0
    _
  %s10 = ssub.s32 1, %s8
  %s11 = scalar_select 0, %s10, %s8
  // Predicated region
  $region2: #{arci_forward.1} parent=0 // pred_check
    _
  $region3: #{arci_forward.1} parent=0 // pred_check_branch
    %13 = sbr.rel (0) target = $region5
  $region4: #{arci_forward.1} parent=0 // pred_region
    _
  $region5: #{arci_forward.1} parent=0 // pred_fallthru
    _
  // Predicated region
  $region6: #{arci_forward.1} parent=0 // pred_check
    _
  $region7: #{arci_forward.1} parent=0 // pred_check_branch
    %15 = sbr.rel (0) target = $region9
  $region8: #{arci_forward.1} parent=0 // pred_region
    _
  $region9: #{arci_forward.1} parent=0 // pred_fallthru
    _
  // Predicated region
  $region10: #{arci_forward.1} parent=0 // pred_check
    _
  $region11: #{arci_forward.1} parent=0 // pred_check_branch
    %17 = sbr.rel (0) target = $region13
  $region12: #{arci_forward.1} parent=0 // pred_region
    _
  $region13: #{arci_forward.1} parent=0 // pred_fallthru
    _
  // Predicated region
  $region14: #{arci_forward.1} parent=0 // pred_check
    _
  $region15: #{arci_forward.1} parent=0 // pred_check_branch
    %19 = sbr.rel (0) target = $region17
  $region16: #{arci_forward.1} parent=0 // pred_region
    _
  $region17: #{arci_forward.1} parent=0 // pred_fallthru
    _
  // Predicated region
  $region18: #{arci_forward.1} parent=0 // pred_check
    _
  $region19: #{arci_forward.1} parent=0 // pred_check_branch
    %21 = sbr.rel (0) target = $region21
  $region20: #{arci_forward.1} parent=0 // pred_region
    _
  $region21: #{arci_forward.1} parent=0 // pred_fallthru
    _
  // Predicated region
  $region22: #{arci_forward.1} parent=0 // pred_check
    _
  $region23: #{arci_forward.1} parent=0 // pred_check_branch
    %23 = sbr.rel (0) target = $region25
  $region24: #{arci_forward.1} parent=0 // pred_region
    _
  $region25: #{arci_forward.1} parent=0 // pred_fallthru
    _
  // Predicated region
  $region26: #{arci_forward.1} parent=0 // pred_check
    _
  $region27: #{arci_forward.1} parent=0 // pred_check_branch
    %25 = sbr.rel (0) target = $region29
  $region28: #{arci_forward.1} parent=0 // pred_region
    _
  $region29: #{arci_forward.1} parent=0 // pred_fallthru
    _
  %v26 = vld [vmem:[%s0] sm:$0xff]
  %v27 = vld [vmem:[%s0 + $0x8] sm:$0xff]
  %v28 = vld [vmem:[%s0 + $0x10] sm:$0xff]
  %v29 = vld [vmem:[%s0 + $0x18] sm:$0xff]
  %v30 = vld [vmem:[%s0 + $0x20] sm:$0xff]
  %v31 = vld [vmem:[%s0 + $0x28] sm:$0xff]
  %v32 = vld [vmem:[%s0 + $0x30] sm:$0xff]
  %v33 = vld [vmem:[%s0 + $0x38] sm:$0xff]
  %v34 = vlaneseq
  %v35 = vand.u32 %v34, 127
  %v36 = vld [vmem:[%s1] sm:$0xff]
  %37 = vset.pattern.permute.xlu0 0
  %38 = vperm.xlu0 %37, %v36
  %v39 = vpop.permute.xlu0 %38
  %vm40 = vcmp.eq.s32.totalorder %v35, %v39
  %v41 = vsel %vm40, 1, 0
  %v42 = vcvt.s32.f32 %v41
  %vm43 = vcmask 523264
  %v45 = vsel %vm43, %v42, 0
  %47 = vmatprep.subr.mxu0 0.0
  %48 = vmatpush1.msra.mxu0 %v26
  %49 = vmatprep.subr.mxu0 0.0
  %50 = vmatpush1.msra.mxu0 %v27
  %51 = vmatprep.subr.mxu0 0.0
  %52 = vmatpush1.msra.mxu0 %v28
  %53 = vmatprep.subr.mxu0 0.0
  %54 = vmatpush1.msra.mxu0 %v29
  %55 = vmatprep.subr.mxu0 0.0
  %56 = vmatpush1.msra.mxu0 %v30
  %57 = vmatprep.subr.mxu0 0.0
  %58 = vmatpush1.msra.mxu0 %v31
  %59 = vmatprep.subr.mxu0 0.0
  %60 = vmatpush1.msra.mxu0 %v32
  %61 = vmatprep.subr.mxu0 0.0
  %62 = vmatpush1.msra.mxu0 %v33
  %63 = vmatprep.subr.mxu0 0.0
  %64 = vmatpush1.msra.mxu0 0.0
  %65 = vmatprep.subr.mxu0 0.0
  %66 = vmatpush1.msra.mxu0 0.0
  %67 = vmatprep.subr.mxu0 0.0
  %68 = vmatpush1.msra.mxu0 0.0
  %69 = vmatprep.subr.mxu0 0.0
  %70 = vmatpush1.msra.mxu0 0.0
  %71 = vmatprep.subr.mxu0 0.0
  %72 = vmatpush1.msra.mxu0 0.0
  %73 = vmatprep.subr.mxu0 0.0
  %74 = vmatpush1.msra.mxu0 0.0
  %75 = vmatprep.subr.mxu0 0.0
  %76 = vmatpush1.msra.mxu0 0.0
  %77 = vmatprep.subr.mxu0 0.0
  %78 = vmatpush1.msra.mxu0 0.0
  %79 = vmatprep.subr.mxu0 0.0
  %80 = vmatpush1.msra.mxu0 0.0
  %81 = vmatprep.subr.mxu0 0.0
  %82 = vmatpush1.msra.mxu0 0.0
  %83 = vmatprep.subr.mxu0 0.0
  %84 = vmatpush1.msra.mxu0 0.0
  %85 = vmatprep.subr.mxu0 0.0
  %86 = vmatpush1.msra.mxu0 0.0
  %87 = vmatprep.subr.mxu0 0.0
  %88 = vmatpush1.msra.mxu0 0.0
  %89 = vmatprep.subr.mxu0 0.0
  %90 = vmatpush1.msra.mxu0 0.0
  %91 = vmatprep.subr.mxu0 0.0
  %92 = vmatpush1.msra.mxu0 0.0
  %93 = vmatprep.subr.mxu0 0.0
  %94 = vmatpush1.msra.mxu0 0.0
  %95 = vmatprep.subr.mxu0 0.0
  %96 = vmatpush1.msra.mxu0 0.0
  %97 = vmatprep.subr.mxu0 0.0
  %98 = vmatpush1.msra.mxu0 0.0
  %99 = vmatprep.subr.mxu0 0.0
  %100 = vmatpush1.msra.mxu0 0.0
  %101 = vmatprep.subr.mxu0 0.0
  %102 = vmatpush1.msra.mxu0 0.0
  %103 = vmatprep.subr.mxu0 0.0
  %104 = vmatpush1.msra.mxu0 0.0
  %105 = vmatprep.subr.mxu0 0.0
  %106 = vmatpush1.msra.mxu0 0.0
  %107 = vmatprep.subr.mxu0 0.0
  %108 = vmatpush1.msra.mxu0 0.0
  %109 = vmatprep.subr.mxu0 0.0
  %110 = vmatpush1.msra.mxu0 0.0
  %111 = vmatprep.mubr.f32.mxu0 0.0
  %112 = vmatmul.mubr.f32.gmra.mrb[0].mxu0 %v45
  %v113 = vpop.f32.mrb[0].mxu0
  %v114 = vadd.f32 0.0, %v113
  %v115 = vpop.f32.mrb[0].mxu0
  %116 = vdwg.mxu0
  %v117 = vld [vmem:[%s2] sm:$0xff]
  %118 = vset.pattern.permute.xlu0 0
  %119 = vperm.xlu0 %118, %v117
  %v120 = vpop.permute.xlu0 %119
  %vm121 = vcmp.eq.s32.totalorder %v35, %v120
  %v122 = vsel %vm121, 1, 0
  %v123 = vcvt.s32.f32 %v122
  %v125 = vsel %vm43, %v123, 0
  %127 = vmatprep.subr.mxu0 0.0
  %128 = vmatpush1.msra.mxu0 %v26
  %129 = vmatprep.subr.mxu0 0.0
  %130 = vmatpush1.msra.mxu0 %v27
  %131 = vmatprep.subr.mxu0 0.0
  %132 = vmatpush1.msra.mxu0 %v28
  %133 = vmatprep.subr.mxu0 0.0
  %134 = vmatpush1.msra.mxu0 %v29
  %135 = vmatprep.subr.mxu0 0.0
  %136 = vmatpush1.msra.mxu0 %v30
  %137 = vmatprep.subr.mxu0 0.0
  %138 = vmatpush1.msra.mxu0 %v31
  %139 = vmatprep.subr.mxu0 0.0
  %140 = vmatpush1.msra.mxu0 %v32
  %141 = vmatprep.subr.mxu0 0.0
  %142 = vmatpush1.msra.mxu0 %v33
  %143 = vmatprep.subr.mxu0 0.0
  %144 = vmatpush1.msra.mxu0 0.0
  %145 = vmatprep.subr.mxu0 0.0
  %146 = vmatpush1.msra.mxu0 0.0
  %147 = vmatprep.subr.mxu0 0.0
  %148 = vmatpush1.msra.mxu0 0.0
  %149 = vmatprep.subr.mxu0 0.0
  %150 = vmatpush1.msra.mxu0 0.0
  %151 = vmatprep.subr.mxu0 0.0
  %152 = vmatpush1.msra.mxu0 0.0
  %153 = vmatprep.subr.mxu0 0.0
  %154 = vmatpush1.msra.mxu0 0.0
  %155 = vmatprep.subr.mxu0 0.0
  %156 = vmatpush1.msra.mxu0 0.0
  %157 = vmatprep.subr.mxu0 0.0
  %158 = vmatpush1.msra.mxu0 0.0
  %159 = vmatprep.subr.mxu0 0.0
  %160 = vmatpush1.msra.mxu0 0.0
  %161 = vmatprep.subr.mxu0 0.0
  %162 = vmatpush1.msra.mxu0 0.0
  %163 = vmatprep.subr.mxu0 0.0
  %164 = vmatpush1.msra.mxu0 0.0
  %165 = vmatprep.subr.mxu0 0.0
  %166 = vmatpush1.msra.mxu0 0.0
  %167 = vmatprep.subr.mxu0 0.0
  %168 = vmatpush1.msra.mxu0 0.0
  %169 = vmatprep.subr.mxu0 0.0
  %170 = vmatpush1.msra.mxu0 0.0
  %171 = vmatprep.subr.mxu0 0.0
  %172 = vmatpush1.msra.mxu0 0.0
  %173 = vmatprep.subr.mxu0 0.0
  %174 = vmatpush1.msra.mxu0 0.0
  %175 = vmatprep.subr.mxu0 0.0
  %176 = vmatpush1.msra.mxu0 0.0
  %177 = vmatprep.subr.mxu0 0.0
  %178 = vmatpush1.msra.mxu0 0.0
  %179 = vmatprep.subr.mxu0 0.0
  %180 = vmatpush1.msra.mxu0 0.0
  %181 = vmatprep.subr.mxu0 0.0
  %182 = vmatpush1.msra.mxu0 0.0
  %183 = vmatprep.subr.mxu0 0.0
  %184 = vmatpush1.msra.mxu0 0.0
  %185 = vmatprep.subr.mxu0 0.0
  %186 = vmatpush1.msra.mxu0 0.0
  %187 = vmatprep.subr.mxu0 0.0
  %188 = vmatpush1.msra.mxu0 0.0
  %189 = vmatprep.subr.mxu0 0.0
  %190 = vmatpush1.msra.mxu0 0.0
  %191 = vmatprep.mubr.f32.mxu0 0.0
  %192 = vmatmul.mubr.f32.gmra.mrb[0].mxu0 %v125
  %v193 = vpop.f32.mrb[0].mxu0
  %v194 = vadd.f32 0.0, %v193
  %v195 = vpop.f32.mrb[0].mxu0
  %196 = vdwg.mxu0
  %197 = vst [vmem:[#allocation2] sm:$0xff] 0.0
  %198 = vst [vmem:[#allocation2 + $0x8] sm:$0xff] 0.0
  %199 = vst [vmem:[#allocation2 + $0x1] sm:$0xff] %v114
  %v200 = vld [vmem:[#allocation2] sm:$0xff]
  %v201 = vld [vmem:[%s3] sm:$0xff]
  %v202 = vld [vmem:[%s3 + $0x8] sm:$0xff]
  %v203 = vld [vmem:[%s3 + $0x10] sm:$0xff]
  %v204 = vld [vmem:[%s3 + $0x18] sm:$0xff]
  %v205 = vld [vmem:[%s3 + $0x20] sm:$0xff]
  %v206 = vld [vmem:[%s3 + $0x28] sm:$0xff]
  %v207 = vld [vmem:[%s3 + $0x30] sm:$0xff]
  %v208 = vld [vmem:[%s3 + $0x38] sm:$0xff]
  %v209 = vld [vmem:[%s3 + $0x40] sm:$0xff]
  %v210 = vld [vmem:[%s3 + $0x48] sm:$0xff]
  %v211 = vld [vmem:[%s3 + $0x50] sm:$0xff]
  %v212 = vld [vmem:[%s3 + $0x58] sm:$0xff]
  %v213 = vld [vmem:[%s3 + $0x60] sm:$0xff]
  %v214 = vld [vmem:[%s3 + $0x68] sm:$0xff]
  %v215 = vld [vmem:[%s3 + $0x70] sm:$0xff]
  %v216 = vld [vmem:[%s3 + $0x78] sm:$0xff]
  %v217 = vld [vmem:[#allocation2 + $0x1] sm:$0xff]
  %v218 = vld [vmem:[%s3 + $0x80] sm:$0xff]
  %v219 = vld [vmem:[%s3 + $0x88] sm:$0xff]
  %v220 = vld [vmem:[%s3 + $0x90] sm:$0xff]
  %v221 = vld [vmem:[%s3 + $0x98] sm:$0xff]
  %v222 = vld [vmem:[%s3 + $0xa0] sm:$0xff]
  %v223 = vld [vmem:[%s3 + $0xa8] sm:$0xff]
  %v224 = vld [vmem:[%s3 + $0xb0] sm:$0xff]
  %v225 = vld [vmem:[%s3 + $0xb8] sm:$0xff]
  %v226 = vld [vmem:[%s3 + $0xc0] sm:$0xff]
  %v227 = vld [vmem:[%s3 + $0xc8] sm:$0xff]
  %v228 = vld [vmem:[%s3 + $0xd0] sm:$0xff]
  %v229 = vld [vmem:[%s3 + $0xd8] sm:$0xff]
  %v230 = vld [vmem:[%s3 + $0xe0] sm:$0xff]
  %v231 = vld [vmem:[%s3 + $0xe8] sm:$0xff]
  %v232 = vld [vmem:[%s3 + $0xf0] sm:$0xff]
  %v233 = vld [vmem:[%s3 + $0xf8] sm:$0xff]
  %234 = vmatprep.subr.mxu0 0.0
  %235 = vmatpush1.msra.mxu0 %v218
  %236 = vmatprep.subr.mxu0 0.0
  %237 = vmatpush1.msra.mxu0 %v219
  %238 = vmatprep.subr.mxu0 0.0
  %239 = vmatpush1.msra.mxu0 %v220
  %240 = vmatprep.subr.mxu0 0.0
  %241 = vmatpush1.msra.mxu0 %v221
  %242 = vmatprep.subr.mxu0 0.0
  %243 = vmatpush1.msra.mxu0 %v222
  %244 = vmatprep.subr.mxu0 0.0
  %245 = vmatpush1.msra.mxu0 %v223
  %246 = vmatprep.subr.mxu0 0.0
  %247 = vmatpush1.msra.mxu0 %v224
  %248 = vmatprep.subr.mxu0 0.0
  %249 = vmatpush1.msra.mxu0 %v225
  %250 = vmatprep.subr.mxu0 0.0
  %251 = vmatpush1.msra.mxu0 %v226
  %252 = vmatprep.subr.mxu0 0.0
  %253 = vmatpush1.msra.mxu0 %v227
  %254 = vmatprep.subr.mxu0 0.0
  %255 = vmatpush1.msra.mxu0 %v228
  %256 = vmatprep.subr.mxu0 0.0
  %257 = vmatpush1.msra.mxu0 %v229
  %258 = vmatprep.subr.mxu0 0.0
  %259 = vmatpush1.msra.mxu0 %v230
  %260 = vmatprep.subr.mxu0 0.0
  %261 = vmatpush1.msra.mxu0 %v231
  %262 = vmatprep.subr.mxu0 0.0
  %263 = vmatpush1.msra.mxu0 %v232
  %264 = vmatprep.subr.mxu0 0.0
  %265 = vmatpush1.msra.mxu0 %v233
  %266 = vmatprep.subr.mxu0 0.0
  %267 = vmatpush1.msra.mxu0 0.0
  %268 = vmatprep.subr.mxu0 0.0
  %269 = vmatpush1.msra.mxu0 0.0
  %270 = vmatprep.subr.mxu0 0.0
  %271 = vmatpush1.msra.mxu0 0.0
  %272 = vmatprep.subr.mxu0 0.0
  %273 = vmatpush1.msra.mxu0 0.0
  %274 = vmatprep.subr.mxu0 0.0
  %275 = vmatpush1.msra.mxu0 0.0
  %276 = vmatprep.subr.mxu0 0.0
  %277 = vmatpush1.msra.mxu0 0.0
  %278 = vmatprep.subr.mxu0 0.0
  %279 = vmatpush1.msra.mxu0 0.0
  %280 = vmatprep.subr.mxu0 0.0
  %281 = vmatpush1.msra.mxu0 0.0
  %282 = vmatprep.subr.mxu0 0.0
  %283 = vmatpush1.msra.mxu0 0.0
  %284 = vmatprep.subr.mxu0 0.0
  %285 = vmatpush1.msra.mxu0 0.0
  %286 = vmatprep.subr.mxu0 0.0
  %287 = vmatpush1.msra.mxu0 0.0
  %288 = vmatprep.subr.mxu0 0.0
  %289 = vmatpush1.msra.mxu0 0.0
  %290 = vmatprep.subr.mxu0 0.0
  %291 = vmatpush1.msra.mxu0 0.0
  %292 = vmatprep.subr.mxu0 0.0
  %293 = vmatpush1.msra.mxu0 0.0
  %294 = vmatprep.subr.mxu0 0.0
  %295 = vmatpush1.msra.mxu0 0.0
  %296 = vmatprep.subr.mxu0 0.0
  %297 = vmatpush1.msra.mxu0 0.0
  %298 = vmatprep.mubr.f32.mxu0 0.0
  %299 = vmatmul.mubr.f32.gmra.mrb[0].mxu0 %v217
  %v300 = vpop.f32.mrb[0].mxu0
  %v301 = vadd.f32 0.0, %v300
  %v302 = vpop.f32.mrb[0].mxu0
  %303 = vdwg.mxu0
  %304 = vmatprep.subr.mxu0 0.0
  %305 = vmatpush1.msra.mxu0 %v201
  %306 = vmatprep.subr.mxu0 0.0
  %307 = vmatpush1.msra.mxu0 %v202
  %308 = vmatprep.subr.mxu0 0.0
  %309 = vmatpush1.msra.mxu0 %v203
  %310 = vmatprep.subr.mxu0 0.0
  %311 = vmatpush1.msra.mxu0 %v204
  %312 = vmatprep.subr.mxu0 0.0
  %313 = vmatpush1.msra.mxu0 %v205
  %314 = vmatprep.subr.mxu0 0.0
  %315 = vmatpush1.msra.mxu0 %v206
  %316 = vmatprep.subr.mxu0 0.0
  %317 = vmatpush1.msra.mxu0 %v207
  %318 = vmatprep.subr.mxu0 0.0
  %319 = vmatpush1.msra.mxu0 %v208
  %320 = vmatprep.subr.mxu0 0.0
  %321 = vmatpush1.msra.mxu0 %v209
  %322 = vmatprep.subr.mxu0 0.0
  %323 = vmatpush1.msra.mxu0 %v210
  %324 = vmatprep.subr.mxu0 0.0
  %325 = vmatpush1.msra.mxu0 %v211
  %326 = vmatprep.subr.mxu0 0.0
  %327 = vmatpush1.msra.mxu0 %v212
  %328 = vmatprep.subr.mxu0 0.0
  %329 = vmatpush1.msra.mxu0 %v213
  %330 = vmatprep.subr.mxu0 0.0
  %331 = vmatpush1.msra.mxu0 %v214
  %332 = vmatprep.subr.mxu0 0.0
  %333 = vmatpush1.msra.mxu0 %v215
  %334 = vmatprep.subr.mxu0 0.0
  %335 = vmatpush1.msra.mxu0 %v216
  %336 = vmatprep.subr.mxu0 0.0
  %337 = vmatpush1.msra.mxu0 0.0
  %338 = vmatprep.subr.mxu0 0.0
  %339 = vmatpush1.msra.mxu0 0.0
  %340 = vmatprep.subr.mxu0 0.0
  %341 = vmatpush1.msra.mxu0 0.0
  %342 = vmatprep.subr.mxu0 0.0
  %343 = vmatpush1.msra.mxu0 0.0
  %344 = vmatprep.subr.mxu0 0.0
  %345 = vmatpush1.msra.mxu0 0.0
  %346 = vmatprep.subr.mxu0 0.0
  %347 = vmatpush1.msra.mxu0 0.0
  %348 = vmatprep.subr.mxu0 0.0
  %349 = vmatpush1.msra.mxu0 0.0
  %350 = vmatprep.subr.mxu0 0.0
  %351 = vmatpush1.msra.mxu0 0.0
  %352 = vmatprep.subr.mxu0 0.0
  %353 = vmatpush1.msra.mxu0 0.0
  %354 = vmatprep.subr.mxu0 0.0
  %355 = vmatpush1.msra.mxu0 0.0
  %356 = vmatprep.subr.mxu0 0.0
  %357 = vmatpush1.msra.mxu0 0.0
  %358 = vmatprep.subr.mxu0 0.0
  %359 = vmatpush1.msra.mxu0 0.0
  %360 = vmatprep.subr.mxu0 0.0
  %361 = vmatpush1.msra.mxu0 0.0
  %362 = vmatprep.subr.mxu0 0.0
  %363 = vmatpush1.msra.mxu0 0.0
  %364 = vmatprep.subr.mxu0 0.0
  %365 = vmatpush1.msra.mxu0 0.0
  %366 = vmatprep.subr.mxu0 0.0
  %367 = vmatpush1.msra.mxu0 0.0
  %368 = vmatprep.mubr.f32.mxu0 0.0
  %369 = vmatmul.mubr.f32.gmra.mrb[0].mxu0 %v200
  %v370 = vpop.f32.mrb[0].mxu0
  %v371 = vadd.f32 %v301, %v370
  %v372 = vpop.f32.mrb[0].mxu0
  %373 = vdwg.mxu0
  %v374 = vld [vmem:[#allocation2 + $0x2] sm:$0xff]
  %v375 = vld [vmem:[%s3 + $0x100] sm:$0xff]
  %v376 = vld [vmem:[%s3 + $0x108] sm:$0xff]
  %v377 = vld [vmem:[%s3 + $0x110] sm:$0xff]
  %v378 = vld [vmem:[%s3 + $0x118] sm:$0xff]
  %v379 = vld [vmem:[%s3 + $0x120] sm:$0xff]
  %v380 = vld [vmem:[%s3 + $0x128] sm:$0xff]
  %v381 = vld [vmem:[%s3 + $0x130] sm:$0xff]
  %v382 = vld [vmem:[%s3 + $0x138] sm:$0xff]
  %v383 = vld [vmem:[%s3 + $0x140] sm:$0xff]
  %v384 = vld [vmem:[%s3 + $0x148] sm:$0xff]
  %v385 = vld [vmem:[%s3 + $0x150] sm:$0xff]
  %v386 = vld [vmem:[%s3 + $0x158] sm:$0xff]
  %v387 = vld [vmem:[%s3 + $0x160] sm:$0xff]
  %v388 = vld [vmem:[%s3 + $0x168] sm:$0xff]
  %v389 = vld [vmem:[%s3 + $0x170] sm:$0xff]
  %v390 = vld [vmem:[%s3 + $0x178] sm:$0xff]
  %391 = vmatprep.subr.mxu0 0.0
  %392 = vmatpush1.msra.mxu0 %v375
  %393 = vmatprep.subr.mxu0 0.0
  %394 = vmatpush1.msra.mxu0 %v376
  %395 = vmatprep.subr.mxu0 0.0
  %396 = vmatpush1.msra.mxu0 %v377
  %397 = vmatprep.subr.mxu0 0.0
  %398 = vmatpush1.msra.mxu0 %v378
  %399 = vmatprep.subr.mxu0 0.0
  %400 = vmatpush1.msra.mxu0 %v379
  %401 = vmatprep.subr.mxu0 0.0
  %402 = vmatpush1.msra.mxu0 %v380
  %403 = vmatprep.subr.mxu0 0.0
  %404 = vmatpush1.msra.mxu0 %v381
  %405 = vmatprep.subr.mxu0 0.0
  %406 = vmatpush1.msra.mxu0 %v382
  %407 = vmatprep.subr.mxu0 0.0
  %408 = vmatpush1.msra.mxu0 %v383
  %409 = vmatprep.subr.mxu0 0.0
  %410 = vmatpush1.msra.mxu0 %v384
  %411 = vmatprep.subr.mxu0 0.0
  %412 = vmatpush1.msra.mxu0 %v385
  %413 = vmatprep.subr.mxu0 0.0
  %414 = vmatpush1.msra.mxu0 %v386
  %415 = vmatprep.subr.mxu0 0.0
  %416 = vmatpush1.msra.mxu0 %v387
  %417 = vmatprep.subr.mxu0 0.0
  %418 = vmatpush1.msra.mxu0 %v388
  %419 = vmatprep.subr.mxu0 0.0
  %420 = vmatpush1.msra.mxu0 %v389
  %421 = vmatprep.subr.mxu0 0.0
  %422 = vmatpush1.msra.mxu0 %v390
  %423 = vmatprep.subr.mxu0 0.0
  %424 = vmatpush1.msra.mxu0 0.0
  %425 = vmatprep.subr.mxu0 0.0
  %426 = vmatpush1.msra.mxu0 0.0
  %427 = vmatprep.subr.mxu0 0.0
  %428 = vmatpush1.msra.mxu0 0.0
  %429 = vmatprep.subr.mxu0 0.0
  %430 = vmatpush1.msra.mxu0 0.0
  %431 = vmatprep.subr.mxu0 0.0
  %432 = vmatpush1.msra.mxu0 0.0
  %433 = vmatprep.subr.mxu0 0.0
  %434 = vmatpush1.msra.mxu0 0.0
  %435 = vmatprep.subr.mxu0 0.0
  %436 = vmatpush1.msra.mxu0 0.0
  %437 = vmatprep.subr.mxu0 0.0
  %438 = vmatpush1.msra.mxu0 0.0
  %439 = vmatprep.subr.mxu0 0.0
  %440 = vmatpush1.msra.mxu0 0.0
  %441 = vmatprep.subr.mxu0 0.0
  %442 = vmatpush1.msra.mxu0 0.0
  %443 = vmatprep.subr.mxu0 0.0
  %444 = vmatpush1.msra.mxu0 0.0
  %445 = vmatprep.subr.mxu0 0.0
  %446 = vmatpush1.msra.mxu0 0.0
  %447 = vmatprep.subr.mxu0 0.0
  %448 = vmatpush1.msra.mxu0 0.0
  %449 = vmatprep.subr.mxu0 0.0
  %450 = vmatpush1.msra.mxu0 0.0
  %451 = vmatprep.subr.mxu0 0.0
  %452 = vmatpush1.msra.mxu0 0.0
  %453 = vmatprep.subr.mxu0 0.0
  %454 = vmatpush1.msra.mxu0 0.0
  %455 = vmatprep.mubr.f32.mxu0 0.0
  %456 = vmatmul.mubr.f32.gmra.mrb[0].mxu0 %v374
  %v457 = vpop.f32.mrb[0].mxu0
  %v458 = vadd.f32 0.0, %v457
  %v459 = vpop.f32.mrb[0].mxu0
  %460 = vdwg.mxu0
  %v461 = vadd.f32 %v371, %v458
  %v462 = vld [vmem:[%s4] sm:$0x1]
  %v464 = vlaneseq
  %v465 = vshrl.u32 %v464, 7
  %v466 = vsub.s32 0, %v465
  %v467 = vrot.slane %v462, %v466
  %v469 = vadd.f32 %v461, %v467
  %v470 = vmax.f32 %v469, 0.0
  %vm471 = vcmask 123904
  %v472 = vsel %vm471, %v470, -inf
  %v473 = vrot.slane %v472, 4
  %v474 = vmax.f32 %v472, %v473
  %v475 = vrot.slane %v474, 2
  %v476 = vmax.f32 %v474, %v475
  %v477 = vrot.slane %v476, 1
  %v478 = vmax.f32 %v476, %v477
  %vm479 = vcmask 125954
  %v480 = vsel %vm479, %v470, -inf
  %v481 = vrot.slane %v480, 4
  %v482 = vmax.f32 %v480, %v481
  %v483 = vrot.slane %v482, 2
  %v484 = vmax.f32 %v482, %v483
  %v485 = vrot.slane %v484, 1
  %v486 = vmax.f32 %v484, %v485
  %vm487 = vcmask 128004
  %v488 = vsel %vm487, %v470, -inf
  %v489 = vrot.slane %v488, 4
  %v490 = vmax.f32 %v488, %v489
  %v491 = vrot.slane %v490, 2
  %v492 = vmax.f32 %v490, %v491
  %v493 = vrot.slane %v492, 1
  %v494 = vmax.f32 %v492, %v493
  %vm495 = vcmask 130054
  %v496 = vsel %vm495, %v470, -inf
  %v497 = vrot.slane %v496, 4
  %v498 = vmax.f32 %v496, %v497
  %v499 = vrot.slane %v498, 2
  %v500 = vmax.f32 %v498, %v499
  %v501 = vrot.slane %v500, 1
  %v502 = vmax.f32 %v500, %v501
  %vm503 = vcmask 1040384
  %v504 = vsel %vm503, %v478, %v486
  %vm505 = vcmask 1041408
  %v506 = vsel %vm505, %v504, %v494
  %vm507 = vcmask 1042432
  %v508 = vsel %vm507, %v506, %v502
  %v509 = vld [vmem:[%s5] sm:$0xff]
  %v510 = vld [vmem:[%s5 + $0x8] sm:$0xff]
  %v511 = vld [vmem:[%s5 + $0x10] sm:$0xff]
  %v512 = vld [vmem:[%s5 + $0x18] sm:$0xff]
  %v513 = vld [vmem:[%s5 + $0x20] sm:$0xff]
  %v514 = vld [vmem:[%s5 + $0x28] sm:$0xff]
  %v515 = vld [vmem:[%s5 + $0x30] sm:$0xff]
  %v516 = vld [vmem:[%s5 + $0x38] sm:$0xff]
  %vm517 = vcmask 130048
  %v519 = vsel %vm517, %v508, 0
  %521 = vmatprep.subr.mxu0 %v510
  %522 = vmatpush1.msra.mxu0 %v509
  %523 = vmatprep.subr.mxu0 %v514
  %524 = vmatpush1.msra.mxu0 %v513
  %525 = vmatprep.subr.mxu0 0.0
  %526 = vmatpush1.msra.mxu0 0.0
  %527 = vmatprep.subr.mxu0 0.0
  %528 = vmatpush1.msra.mxu0 0.0
  %529 = vmatprep.subr.mxu0 0.0
  %530 = vmatpush1.msra.mxu0 0.0
  %531 = vmatprep.subr.mxu0 0.0
  %532 = vmatpush1.msra.mxu0 0.0
  %533 = vmatprep.subr.mxu0 0.0
  %534 = vmatpush1.msra.mxu0 0.0
  %535 = vmatprep.subr.mxu0 0.0
  %536 = vmatpush1.msra.mxu0 0.0
  %537 = vmatprep.subr.mxu0 0.0
  %538 = vmatpush1.msra.mxu0 0.0
  %539 = vmatprep.subr.mxu0 0.0
  %540 = vmatpush1.msra.mxu0 0.0
  %541 = vmatprep.subr.mxu0 0.0
  %542 = vmatpush1.msra.mxu0 0.0
  %543 = vmatprep.subr.mxu0 0.0
  %544 = vmatpush1.msra.mxu0 0.0
  %545 = vmatprep.subr.mxu0 0.0
  %546 = vmatpush1.msra.mxu0 0.0
  %547 = vmatprep.subr.mxu0 0.0
  %548 = vmatpush1.msra.mxu0 0.0
  %549 = vmatprep.subr.mxu0 0.0
  %550 = vmatpush1.msra.mxu0 0.0
  %551 = vmatprep.subr.mxu0 0.0
  %552 = vmatpush1.msra.mxu0 0.0
  %553 = vmatprep.subr.mxu0 0.0
  %554 = vmatpush1.msra.mxu0 0.0
  %555 = vmatprep.subr.mxu0 0.0
  %556 = vmatpush1.msra.mxu0 0.0
  %557 = vmatprep.subr.mxu0 0.0
  %558 = vmatpush1.msra.mxu0 0.0
  %559 = vmatprep.subr.mxu0 0.0
  %560 = vmatpush1.msra.mxu0 0.0
  %561 = vmatprep.subr.mxu0 0.0
  %562 = vmatpush1.msra.mxu0 0.0
  %563 = vmatprep.subr.mxu0 0.0
  %564 = vmatpush1.msra.mxu0 0.0
  %565 = vmatprep.subr.mxu0 0.0
  %566 = vmatpush1.msra.mxu0 0.0
  %567 = vmatprep.subr.mxu0 0.0
  %568 = vmatpush1.msra.mxu0 0.0
  %569 = vmatprep.subr.mxu0 0.0
  %570 = vmatpush1.msra.mxu0 0.0
  %571 = vmatprep.subr.mxu0 0.0
  %572 = vmatpush1.msra.mxu0 0.0
  %573 = vmatprep.subr.mxu0 0.0
  %574 = vmatpush1.msra.mxu0 0.0
  %575 = vmatprep.subr.mxu0 0.0
  %576 = vmatpush1.msra.mxu0 0.0
  %577 = vmatprep.subr.mxu0 0.0
  %578 = vmatpush1.msra.mxu0 0.0
  %579 = vmatprep.subr.mxu0 0.0
  %580 = vmatpush1.msra.mxu0 0.0
  %581 = vmatprep.subr.mxu0 0.0
  %582 = vmatpush1.msra.mxu0 0.0
  %583 = vmatprep.subr.mxu0 0.0
  %584 = vmatpush1.msra.mxu0 0.0
  %585 = vmatprep.mubr.f32.mxu0 0.0
  %586 = vmatmul.mubr.f32.gmra.mrb[0].mxu0 %v519
  %v587 = vpop.f32.mrb[0].mxu0
  %v588 = vadd.f32 0.0, %v587
  %v589 = vpop.f32.mrb[0].mxu0
  %v590 = vadd.f32 0.0, %v589
  %591 = vdwg.mxu0
  %592 = vmatprep.subr.mxu0 %v512
  %593 = vmatpush1.msra.mxu0 %v511
  %594 = vmatprep.subr.mxu0 %v516
  %595 = vmatpush1.msra.mxu0 %v515
  %596 = vmatprep.subr.mxu0 0.0
  %597 = vmatpush1.msra.mxu0 0.0
  %598 = vmatprep.subr.mxu0 0.0
  %599 = vmatpush1.msra.mxu0 0.0
  %600 = vmatprep.subr.mxu0 0.0
  %601 = vmatpush1.msra.mxu0 0.0
  %602 = vmatprep.subr.mxu0 0.0
  %603 = vmatpush1.msra.mxu0 0.0
  %604 = vmatprep.subr.mxu0 0.0
  %605 = vmatpush1.msra.mxu0 0.0
  %606 = vmatprep.subr.mxu0 0.0
  %607 = vmatpush1.msra.mxu0 0.0
  %608 = vmatprep.subr.mxu0 0.0
  %609 = vmatpush1.msra.mxu0 0.0
  %610 = vmatprep.subr.mxu0 0.0
  %611 = vmatpush1.msra.mxu0 0.0
  %612 = vmatprep.subr.mxu0 0.0
  %613 = vmatpush1.msra.mxu0 0.0
  %614 = vmatprep.subr.mxu0 0.0
  %615 = vmatpush1.msra.mxu0 0.0
  %616 = vmatprep.subr.mxu0 0.0
  %617 = vmatpush1.msra.mxu0 0.0
  %618 = vmatprep.subr.mxu0 0.0
  %619 = vmatpush1.msra.mxu0 0.0
  %620 = vmatprep.subr.mxu0 0.0
  %621 = vmatpush1.msra.mxu0 0.0
  %622 = vmatprep.subr.mxu0 0.0
  %623 = vmatpush1.msra.mxu0 0.0
  %624 = vmatprep.subr.mxu0 0.0
  %625 = vmatpush1.msra.mxu0 0.0
  %626 = vmatprep.subr.mxu0 0.0
  %627 = vmatpush1.msra.mxu0 0.0
  %628 = vmatprep.subr.mxu0 0.0
  %629 = vmatpush1.msra.mxu0 0.0
  %630 = vmatprep.subr.mxu0 0.0
  %631 = vmatpush1.msra.mxu0 0.0
  %632 = vmatprep.subr.mxu0 0.0
  %633 = vmatpush1.msra.mxu0 0.0
  %634 = vmatprep.subr.mxu0 0.0
  %635 = vmatpush1.msra.mxu0 0.0
  %636 = vmatprep.subr.mxu0 0.0
  %637 = vmatpush1.msra.mxu0 0.0
  %638 = vmatprep.subr.mxu0 0.0
  %639 = vmatpush1.msra.mxu0 0.0
  %640 = vmatprep.subr.mxu0 0.0
  %641 = vmatpush1.msra.mxu0 0.0
  %642 = vmatprep.subr.mxu0 0.0
  %643 = vmatpush1.msra.mxu0 0.0
  %644 = vmatprep.subr.mxu0 0.0
  %645 = vmatpush1.msra.mxu0 0.0
  %646 = vmatprep.subr.mxu0 0.0
  %647 = vmatpush1.msra.mxu0 0.0
  %648 = vmatprep.subr.mxu0 0.0
  %649 = vmatpush1.msra.mxu0 0.0
  %650 = vmatprep.subr.mxu0 0.0
  %651 = vmatpush1.msra.mxu0 0.0
  %652 = vmatprep.subr.mxu0 0.0
  %653 = vmatpush1.msra.mxu0 0.0
  %654 = vmatprep.subr.mxu0 0.0
  %655 = vmatpush1.msra.mxu0 0.0
  %656 = vmatprep.mubr.f32.mxu0 0.0
  %657 = vmatmul.mubr.f32.gmra.mrb[0].mxu0 %v519
  %v658 = vpop.f32.mrb[0].mxu0
  %v659 = vadd.f32 0.0, %v658
  %v660 = vpop.f32.mrb[0].mxu0
  %v661 = vadd.f32 0.0, %v660
  %662 = vdwg.mxu0
  %v663 = vld [vmem:[%s6] sm:$0x1]
  %v664 = vadd.f32 %v663, %v588
  %v667 = vunpack.c.l.s4 1966171168
  %v668 = vunpack.c.0.s8 %v667
  %v669 = vlaneseq
  %v670 = vshrl.u32 %v669, 7
  %v671 = vsub.s32 %v668, %v670
  %v672 = vrot.slane %v590, %v671
  %v673 = vcombine.high %v672, %v672
  %v675 = vunpack.c.l.s4 1966171168
  %v676 = vunpack.c.0.s8 %v675
  %v677 = vlaneseq
  %v678 = vshrl.u32 %v677, 7
  %v679 = vsub.s32 %v676, %v678
  %v680 = vrot.slane %v673, %v679
  %v682 = vadd.f32 %v664, %v680
  %v685 = vunpack.c.l.s4 1966171168
  %v686 = vunpack.c.0.s8 %v685
  %v687 = vlaneseq
  %v688 = vshrl.u32 %v687, 7
  %v689 = vsub.s32 %v686, %v688
  %v690 = vrot.slane %v659, %v689
  %v692 = vunpack.c.l.s4 1966171168
  %v693 = vunpack.c.0.s8 %v692
  %v694 = vlaneseq
  %v695 = vshrl.u32 %v694, 7
  %v696 = vsub.s32 %v693, %v695
  %v697 = vrot.slane %v690, %v696
  %v698 = vcombine.high %v697, %v697
  %v700 = vadd.f32 %v682, %v698
  %v703 = vunpack.c.l.s4 1966171168
  %v704 = vunpack.c.0.s8 %v703
  %v705 = vlaneseq
  %v706 = vshrl.u32 %v705, 7
  %v707 = vsub.s32 %v704, %v706
  %v708 = vrot.slane %v661, %v707
  %v709 = vcombine.high %v708, %v708
  %v711 = vunpack.c.l.s4 1966171168
  %v712 = vunpack.c.0.s8 %v711
  %v713 = vlaneseq
  %v714 = vshrl.u32 %v713, 7
  %v715 = vsub.s32 %v712, %v714
  %v716 = vrot.slane %v709, %v715
  %v717 = vcombine.high %v716, %v716
  %v719 = vadd.f32 %v700, %v717
  %v721 = vlaneseq
  %v722 = vshrl.u32 %v721, 7
  %v723 = vsub.s32 0, %v722
  %v724 = vrot.slane %v719, %v723
  %v726 = vmul.f32 %v724, %v194
  %727 = vst [vmem:[%s7] sm:$0xff] %v726
  // Predicated region
  $region30: #{arci_forward.1} parent=0 // pred_check
    _
  $region31: #{arci_forward.1} parent=0 // pred_check_branch
    %729 = sbr.rel (0) target = $region33
  $region32: #{arci_forward.1} parent=0 // pred_region
    _
  $region33: #{arci_forward.1} parent=0 // pred_fallthru
    _
  // Predicated region
  $region34: #{arci_forward.1} parent=0 // pred_check
    _
  $region35: #{arci_forward.1} parent=0 // pred_check_branch
    %731 = sbr.rel (0) target = $region37
  $region36: #{arci_forward.1} parent=0 // pred_region
    _
  $region37: #{arci_forward.1} parent=0 // pred_fallthru
    _

</llo_original>
